<compile_context>
chip_gen: v6e
topology: v6e:2x2x1
jax: 0.10.0
libtpu: 0.0.40
codegen_flags: <defaults>
</compile_context>

<pallas_src>
import functools
import math

import jax
import jax.numpy as jnp
from jax import lax
from jax.experimental import pallas as pl
from jax.experimental.pallas import tpu as pltpu

N = 32          # network size (global `N` in the reference script)
DELTA_T = 0.1   # integration step (global `delta_t` in the reference script)

_LANE = 128                      # TPU vreg lane width
_TARGET_BLOCK_BYTES = 4 << 20    # ~roofline knee; 4x this (double-buffered
                                 # in+out) stays under the 32 MiB scoped default


def _lcm(a, b):
    return a * b // math.gcd(a, b)


# ---------------------------------------------------------------------------
# Kernel bodies
# ---------------------------------------------------------------------------
def _dynamics_kernel_native(x_ref, w_ref, o_ref, *, delta_t, lane_roll):
    """Native layout: x_ref / o_ref are (TB, N, T); w_ref is (N, N)."""
    tb, n, t_len = x_ref.shape
    w = w_ref[...]                                            # resident in VMEM
    t_idx = lax.broadcasted_iota(jnp.int32, (n, t_len), 1)    # hoisted

    def body(b, carry):
        x = x_ref[b]                                          # (N, T)
        # Update for every column (the extra, discarded column T-1 is free --
        # it already lives in the lane-padded vregs) -> no unaligned slices.
        y = jnp.dot(w, jnp.tanh(x), preferred_element_type=jnp.float32)
        upd = (1.0 - delta_t) * x + delta_t * y
        if lane_roll:
            # T % 128 == 0: shift one column right with an XLU lane rotate,
            # splice the original t == 0 column back in, ONE full store.
            shifted = pltpu.roll(upd, shift=1, axis=1)
            o_ref[b] = jnp.where(t_idx == 0, x, shifted)
        else:
            # Tiny / unaligned T: stores to a <128-lane minor dim are masked
            # regardless, so keep the simple, robust two-store splice.
            o_ref[b, :, 0:1] = x[:, 0:1]
            o_ref[b, :, 1:t_len] = upd[:, : t_len - 1]
        return carry

    lax.fori_loop(0, tb, body, 0)


def _dynamics_kernel_folded(x_ref, w_ref, o_ref, *, delta_t, seq_len):
    """Lane-dense folded layout: x_ref / o_ref are (N, LB) slices of (N, B*T)."""
    x = x_ref[...]                                            # (N, LB)
    w = w_ref[...]                                            # (N, N)
    y = jnp.dot(w, jnp.tanh(x), preferred_element_type=jnp.float32)
    upd = (1.0 - delta_t) * x + delta_t * y
    # LB is a multiple of lcm(T, 128): the lane rotate is tile-aligned and
    # every block's column 0 is a t == 0 column, so the roll wrap-around is
    # always overwritten by the select below.
    shifted = pltpu.roll(upd, shift=1, axis=1)
    t_idx = lax.broadcasted_iota(jnp.int32, x.shape, 1) % seq_len
    o_ref[...] = jnp.where(t_idx == 0, x, shifted)


# ---------------------------------------------------------------------------
# Wrappers
# ---------------------------------------------------------------------------
def _vmem_limit_bytes(block_bytes, n):
    # Double-buffered input + output block + resident W + headroom, clipped to
    # [32 MiB, 48 MiB]: >= the scoped default everywhere and well under the
    # 64 MiB physical VMEM of a v7x TensorCore (v5e/v6e have 128 MiB).
    need = 4 * block_bytes + n * n * 4 + (2 << 20)
    return int(min(max(need, 32 << 20), 48 << 20))


def _cost_estimate(batch, n, seq_len):
    cols = batch * (seq_len - 1)
    return pl.CostEstimate(
        flops=2 * n * n * cols + 4 * n * cols,
        transcendentals=n * cols,
        bytes_accessed=2 * batch * n * seq_len * 4 + n * n * 4,
    )


def _forward_native(x, w, delta_t):
    batch, n, seq_len = x.shape
    # Batch tile targeting ~_TARGET_BLOCK_BYTES per block, but keep >= 2 blocks
    # when possible so the "parallel" axis can split across both v7x TCs.
    tb = max(1, _TARGET_BLOCK_BYTES // (n * seq_len * 4))
    if batch >= 2:
        tb = min(tb, pl.cdiv(batch, 2))
    tb = int(min(tb, batch))
    block_bytes = tb * n * seq_len * 4

    kernel = functools.partial(
        _dynamics_kernel_native, delta_t=delta_t,
        lane_roll=(seq_len % _LANE == 0))
    return pl.pallas_call(
        kernel,
        out_shape=jax.ShapeDtypeStruct((batch, n, seq_len), jnp.float32),
        grid_spec=pltpu.PrefetchScalarGridSpec(
            num_scalar_prefetch=0,
            grid=(pl.cdiv(batch, tb),),
            in_specs=[
                pl.BlockSpec((tb, n, seq_len), lambda i: (i, 0, 0)),
                pl.BlockSpec((n, n), lambda i: (0, 0)),    # W resident in VMEM
            ],
            out_specs=pl.BlockSpec((tb, n, seq_len), lambda i: (i, 0, 0)),
        ),
        compiler_params=pltpu.CompilerParams(
            dimension_semantics=("parallel",),
            vmem_limit_bytes=_vmem_limit_bytes(block_bytes, n),
        ),
        cost_estimate=_cost_estimate(batch, n, seq_len),
    )(x, w)


def _forward_folded(x, w, delta_t):
    batch, n, seq_len = x.shape
    total = batch * seq_len
    unit = _lcm(seq_len, _LANE)    # 128-aligned AND trajectory-aligned blocks
    lb = min(total // unit * unit,
             max(unit, (_TARGET_BLOCK_BYTES // (n * 4)) // unit * unit))
    if total >= 2 * unit and pl.cdiv(total, lb) < 2:
        lb = max(unit, (total // 2) // unit * unit)
    block_bytes = n * lb * 4

    # One-time re-layout so the (b, t) columns land on lanes; worth the extra
    # HBM pass only because T << 128 would otherwise leave >90% of every
    # vector op / store masked off.
    xf = jnp.transpose(x, (1, 0, 2)).reshape(n, total)

    kernel = functools.partial(_dynamics_kernel_folded, delta_t=delta_t,
                               seq_len=seq_len)
    yf = pl.pallas_call(
        kernel,
        out_shape=jax.ShapeDtypeStruct((n, total), jnp.float32),
        grid_spec=pltpu.PrefetchScalarGridSpec(
            num_scalar_prefetch=0,
            grid=(pl.cdiv(total, lb),),
            in_specs=[
                pl.BlockSpec((n, lb), lambda i: (0, i)),
                pl.BlockSpec((n, n), lambda i: (0, 0)),    # W resident in VMEM
            ],
            out_specs=pl.BlockSpec((n, lb), lambda i: (0, i)),
        ),
        compiler_params=pltpu.CompilerParams(
            dimension_semantics=("parallel",),
            vmem_limit_bytes=_vmem_limit_bytes(block_bytes, n),
        ),
        cost_estimate=_cost_estimate(batch, n, seq_len),
    )(xf, w)
    return jnp.transpose(yf.reshape(n, batch, seq_len), (1, 0, 2))


def dynamic_model_forward(trajectory, weight, *, delta_t=DELTA_T):
    """trajectory: (B, N, T), weight: (N, N) -> (B, N, T) reconstruction."""
    trajectory = jnp.asarray(trajectory, jnp.float32)
    weight = jnp.asarray(weight, jnp.float32)
    batch, n, seq_len = trajectory.shape
    if seq_len <= 1:
        return trajectory
    # Folded (lane-dense) path only when T << 128 AND there are enough (b, t)
    # columns to build 128-aligned blocks; otherwise the extra transpose pass
    # is not worth it (per perf review) and the native layout is used.
    if seq_len < _LANE and batch * seq_len >= 2 * _lcm(seq_len, _LANE):
        return _forward_folded(trajectory, weight, delta_t)
    return _forward_native(trajectory, weight, delta_t)


def reference_forward(trajectory, weight, delta_t=DELTA_T):
    """Pure-JAX re-implementation of the PyTorch loop, for verification."""
    cur = trajectory[:, :, :-1]
    y = jnp.einsum("nk,bkt->bnt", weight, jnp.tanh(cur),
                   precision=lax.Precision.HIGHEST)
    nxt = (1.0 - delta_t) * cur + delta_t * y
    return jnp.concatenate([trajectory[:, :, :1], nxt], axis=2)


if __name__ == "__main__":
    key = jax.random.PRNGKey(0)
    kw, kx = jax.random.split(key)
    # torch.rand(N, N) -> uniform [0, 1)
    weight = jax.random.uniform(kw, (N, N), dtype=jnp.float32)

    cases = [
        (2, 8),      # tiny (matches the training script scale) -> native path
        (256, 8),    # short trajectories, larger batch          -> folded path
        (4, 256),    # long trajectories, 128-aligned T          -> native+roll
    ]
    for i, (b, t) in enumerate(cases):
        traj = jax.random.normal(jax.random.fold_in(kx, i), (b, N, t),
                                 dtype=jnp.float32)
        out = jax.block_until_ready(dynamic_model_forward(traj, weight))
        ref = reference_forward(traj, weight)
        assert out.shape == (b, N, t)
        # f32 (and possibly bf16 MXU passes) vs the torch module's f64; errors
        # do not accumulate (every step reads the original trajectory) and
        # dt = 0.1 damps matmul rounding, so 2e-3 is a comfortable bound.
        assert jnp.allclose(out, ref, atol=2e-3, rtol=2e-3), (b, t)
    print("KERNEL_OK")
</pallas_src>

<mosaic_0001>
module attributes {stable_mosaic.version = 11 : i64} {
  func.func @_dynamics_kernel_native(%arg0: i32, %arg1: memref<1x32x8xf32, #tpu.memory_space<vmem>>, %arg2: memref<32x32xf32, #tpu.memory_space<vmem>>, %arg3: memref<1x32x8xf32, #tpu.memory_space<vmem>>) attributes {dimension_semantics = [#tpu.dimension_semantics<parallel>], iteration_bounds = array<i64: 2>, scalar_prefetch = 0 : i64, scratch_operands = 0 : i64, tpu.core_type = #tpu.core_type<tc>, window_params = [{transform_indices = @transform_0, window_bounds = array<i64: 1, 32, 8>}, {pipeline_mode = #tpu.pipeline_mode<synchronous>, transform_indices = @transform_1, window_bounds = array<i64: 32, 32>}, {transform_indices = @transform_2, window_bounds = array<i64: 1, 32, 8>}]} {
    %c0 = arith.constant 0 : index
    %c0_0 = arith.constant 0 : index
    %0 = vector.load %arg2[%c0, %c0_0] : memref<32x32xf32, #tpu.memory_space<vmem>>, vector<32x32xf32>
    %c0_i32 = arith.constant 0 : i32
    %1 = arith.index_cast %c0_i32 : i32 to index
    %c0_1 = arith.constant 0 : index
    %c0_2 = arith.constant 0 : index
    %2 = vector.load %arg1[%1, %c0_1, %c0_2] : memref<1x32x8xf32, #tpu.memory_space<vmem>>, vector<1x32x8xf32>
    %3 = vector.shape_cast %2 : vector<1x32x8xf32> to vector<32x8xf32>
    %4 = math.tanh %3 : vector<32x8xf32>
    %cst = arith.constant dense<0.000000e+00> : vector<32x8xf32>
    %5 = tpu.matmul %0, %4, %cst {dimension_numbers = #tpu.dot_dimension_numbers<[1], [0], [0], [1], [0, 0, 1, 1], [], []>} : vector<32x32xf32>, vector<32x8xf32>, vector<32x8xf32> -> vector<32x8xf32>
    %cst_3 = arith.constant 0.899999976 : f32
    %6 = vector.broadcast %cst_3 : f32 to vector<32x8xf32>
    %7 = arith.mulf %6, %3 : vector<32x8xf32>
    %cst_4 = arith.constant 1.000000e-01 : f32
    %8 = vector.broadcast %cst_4 : f32 to vector<32x8xf32>
    %9 = arith.mulf %8, %5 : vector<32x8xf32>
    %10 = arith.addf %7, %9 : vector<32x8xf32>
    %11 = vector.extract_strided_slice %3 {offsets = [0, 0], sizes = [32, 1], strides = [1, 1]} : vector<32x8xf32> to vector<32x1xf32>
    %12 = arith.index_cast %c0_i32 : i32 to index
    %c0_5 = arith.constant 0 : index
    %c0_6 = arith.constant 0 : index
    %13 = vector.load %arg3[%12, %c0_5, %c0_6] : memref<1x32x8xf32, #tpu.memory_space<vmem>>, vector<1x32x1xf32>
    %14 = vector.shape_cast %13 : vector<1x32x1xf32> to vector<32x1xf32>
    %15 = vector.shape_cast %11 : vector<32x1xf32> to vector<1x32x1xf32>
    tpu.vector_store %arg3[%12, %c0_5, %c0_6], %15 {strides = array<i32>} : memref<1x32x8xf32, #tpu.memory_space<vmem>>, vector<1x32x1xf32>,
    %16 = vector.extract_strided_slice %10 {offsets = [0, 0], sizes = [32, 7], strides = [1, 1]} : vector<32x8xf32> to vector<32x7xf32>
    %17 = arith.index_cast %c0_i32 : i32 to index
    %c0_7 = arith.constant 0 : index
    %c1 = arith.constant 1 : index
    %18 = vector.load %arg3[%17, %c0_7, %c1] : memref<1x32x8xf32, #tpu.memory_space<vmem>>, vector<1x32x7xf32>
    %19 = vector.shape_cast %18 : vector<1x32x7xf32> to vector<32x7xf32>
    %20 = vector.shape_cast %16 : vector<32x7xf32> to vector<1x32x7xf32>
    tpu.vector_store %arg3[%17, %c0_7, %c1], %20 {strides = array<i32>} : memref<1x32x8xf32, #tpu.memory_space<vmem>>, vector<1x32x7xf32>,
    %c1_i32 = arith.constant 1 : i32
    return
  }
  func.func @transform_0(%arg0: i32) -> (i32, i32, i32) {
    %c0_i32 = arith.constant 0 : i32
    %c0_i32_0 = arith.constant 0 : i32
    %c0_i32_1 = arith.constant 0 : i32
    return %arg0, %c0_i32, %c0_i32_0 : i32, i32, i32
  }
  func.func @transform_1(%arg0: i32) -> (i32, i32) {
    %c0_i32 = arith.constant 0 : i32
    %c0_i32_0 = arith.constant 0 : i32
    %c0_i32_1 = arith.constant 0 : i32
    return %c0_i32, %c0_i32_0 : i32, i32
  }
  func.func @transform_2(%arg0: i32) -> (i32, i32, i32) {
    %c0_i32 = arith.constant 0 : i32
    %c0_i32_0 = arith.constant 0 : i32
    %c0_i32_1 = arith.constant 0 : i32
    return %arg0, %c0_i32, %c0_i32_0 : i32, i32, i32
  }
}

</mosaic_0001>

<llo_original>
// kernel: tpu_custom_call.1
$region0: #{tpu_custom_call.1}
  #allocation0 [shape = 'u32[]', space=smem, size = 0x4, offset = 0x4, fixed_abs, tag = 'smem constant byte address 0x4 - core index']
  #allocation1 [shape = 'u32[144,128]{1,0:T(1,128)}', space=vmem, size = 0x12000, scoped, tag = 'internal scratch']
  %s0 = inlined_call_operand.vmem [shape: f32[2,32,8], index: 0, kind: input, shape index: {}]
  %s1 = inlined_call_operand.vmem [shape: f32[32,32], index: 1, kind: input, shape index: {}]
  %s2 = inlined_call_operand.vmem [shape: f32[2,32,8], index: 2, kind: output, shape index: {}]
  %s3 = sld [smem:[#allocation0]]
  $region41: #{tpu_custom_call.1} parent=0
    _
  %s5 = ssub.s32 1, %s3
  %s6 = scalar_select 0, %s5, %s3
  loop: start=0, step=1, limit=4
  $region2: #{tpu_custom_call.1} parent=0 // loop_pre_header
    _
  $region3: #{tpu_custom_call.1} parent=0 // loop_header
    %s8 = sphi 0, %s12
    %p9 = scmp.ge.s32.totalorder %s8, 4
    %s18 = sphi 0, %s20
    %s21 = sphi 0, %s18
    %s22 = sphi 0, %s21
    %s38 = sphi 0, %s22
    %s42 = sphi 0, %s42
    %s44 = sphi 0, %s42
    %s45 = sphi 0, %s44
    %s59 = sphi 0, %s45
    %s65 = sphi 0, %s67
    %s68 = sphi 0, %s65
    %s69 = sphi 0, %s68
    %s85 = sphi 0, %s69
  $region4: #{tpu_custom_call.1} parent=0 // loop_header_branch
    %11 = sbr.rel (%p9) target = $region8
  $region5: #{tpu_custom_call.1} parent=0 // loop_body
    %s13 = ssub.s32 %s8, 1
    %s14 = ssub.s32 %s8, 2
    %s15 = sadd.s32 %s8, 1
    %s16 = ssub.s32 %s8, %s15
    %p17 = scmp.eq.s32.totalorder %s16, 0
    %s19 = sadd.s32 %s18, 1
    %s20 = scalar_select %p17, %s18, %s19
    %p23 = pneg %p17
    %p24 = scmp.eq.s32.totalorder %s8, 1
    %p25 = por %p23, %p24
    %p26 = scmp.ne.s32.totalorder %s18, %s21
    %p27 = scmp.eq.s32.totalorder %s8, 0
    %p28 = por %p26, %p27
    %p29 = scmp.ne.s32.totalorder %s18, %s21
    %p30 = scmp.eq.s32.totalorder %s13, 1
    %p31 = por %p29, %p30
    %p32 = scmp.ne.s32.totalorder %s21, %s22
    %p33 = scmp.eq.s32.totalorder %s13, 0
    %p34 = por %p32, %p33
    %p35 = scmp.ne.s32.totalorder %s21, %s22
    %p36 = scmp.eq.s32.totalorder %s14, 1
    %p37 = por %p35, %p36
    %p39 = scmp.ne.s32.totalorder %s22, %s38
    %p40 = scmp.eq.s32.totalorder %s14, 0
    %p41 = por %p39, %p40
    %s43 = sadd.s32 %s42, 1
    %p46 = scmp.eq.s32.totalorder %s8, 1
    %p47 = scmp.ne.s32.totalorder %s42, %s44
    %p48 = scmp.eq.s32.totalorder %s8, 0
    %p49 = por %p47, %p48
    %p50 = scmp.ne.s32.totalorder %s42, %s44
    %p51 = scmp.eq.s32.totalorder %s13, 1
    %p52 = por %p50, %p51
    %p53 = scmp.ne.s32.totalorder %s44, %s45
    %p54 = scmp.eq.s32.totalorder %s13, 0
    %p55 = por %p53, %p54
    %p56 = scmp.ne.s32.totalorder %s44, %s45
    %p57 = scmp.eq.s32.totalorder %s14, 1
    %p58 = por %p56, %p57
    %p60 = scmp.ne.s32.totalorder %s45, %s59
    %p61 = scmp.eq.s32.totalorder %s14, 0
    %p62 = por %p60, %p61
    %s63 = ssub.s32 %s8, %s15
    %p64 = scmp.eq.s32.totalorder %s63, 0
    %s66 = sadd.s32 %s65, 1
    %s67 = scalar_select %p64, %s65, %s66
    %p70 = pneg %p64
    %p71 = scmp.eq.s32.totalorder %s8, 1
    %p72 = por %p70, %p71
    %p73 = scmp.ne.s32.totalorder %s65, %s68
    %p74 = scmp.eq.s32.totalorder %s8, 0
    %p75 = por %p73, %p74
    %p76 = scmp.ne.s32.totalorder %s65, %s68
    %p77 = scmp.eq.s32.totalorder %s13, 1
    %p78 = por %p76, %p77
    %p79 = scmp.ne.s32.totalorder %s68, %s69
    %p80 = scmp.eq.s32.totalorder %s13, 0
    %p81 = por %p79, %p80
    %p82 = scmp.ne.s32.totalorder %s68, %s69
    %p83 = scmp.eq.s32.totalorder %s14, 1
    %p84 = por %p82, %p83
    %p86 = scmp.ne.s32.totalorder %s69, %s85
    %p87 = scmp.eq.s32.totalorder %s14, 0
    %p88 = por %p86, %p87
    %p89 = scmp.le.s32.totalorder 1, %s8
    %p90 = scmp.lt.s32.totalorder %s8, 3
    %p91 = pnand %p89, %p90
    %p92 = pneg %p91
    // Predicated region
    $region9: #{tpu_custom_call.1} parent=5 // pred_check
      _
    $region10: #{tpu_custom_call.1} parent=5 // pred_check_branch
      %94 = sbr.rel (%p91) target = $region12
    $region11: #{tpu_custom_call.1} parent=5 // pred_region
      %s95 = ssub.s32 %s8, 1
      // Predicated region
      $region13: #{tpu_custom_call.1} parent=11 // pred_check
        %p96 = pneg %p55
      $region14: #{tpu_custom_call.1} parent=11 // pred_check_branch
        %98 = sbr.rel (%p96) target = $region16
      $region15: #{tpu_custom_call.1} parent=11 // pred_region
        _
      $region16: #{tpu_custom_call.1} parent=11 // pred_fallthru
        _
    $region12: #{tpu_custom_call.1} parent=5 // pred_fallthru
      _
    %p99 = scmp.lt.s32.totalorder %s8, 2
    // Predicated region
    $region17: #{tpu_custom_call.1} parent=5 // pred_check
      %p100 = pneg %p99
    $region18: #{tpu_custom_call.1} parent=5 // pred_check_branch
      %102 = sbr.rel (%p100) target = $region20
    $region19: #{tpu_custom_call.1} parent=5 // pred_region
      // Predicated region
      $region21: #{tpu_custom_call.1} parent=19 // pred_check
        %p103 = pneg %p28
      $region22: #{tpu_custom_call.1} parent=19 // pred_check_branch
        %105 = sbr.rel (%p103) target = $region24
      $region23: #{tpu_custom_call.1} parent=19 // pred_region
        %p106 = scmp.lt.s32.totalorder %s8, 1
        %s107 = scalar_select %p106, %s8, 1
        %s108 = smul.addr %s107, 4
        %s109 = smul.addr %s108, 8
        %s110 = scalar_lea.vmem %s0, %s109
      $region24: #{tpu_custom_call.1} parent=19 // pred_fallthru
        _
    $region20: #{tpu_custom_call.1} parent=5 // pred_fallthru
      _
    %p111 = scmp.le.s32.totalorder 1, %s8
    %p112 = scmp.lt.s32.totalorder %s8, 3
    %p113 = pnand %p111, %p112
    %p114 = pneg %p113
    // Predicated region
    $region25: #{tpu_custom_call.1} parent=5 // pred_check
      _
    $region26: #{tpu_custom_call.1} parent=5 // pred_check_branch
      %116 = sbr.rel (%p113) target = $region28
    $region27: #{tpu_custom_call.1} parent=5 // pred_region
      %s117 = ssub.s32 %s8, 1
      %p118 = scmp.lt.s32.totalorder %s13, 1
      %s119 = scalar_select %p118, %s13, 1
      %s120 = smul.addr %s119, 4
      %s121 = smul.addr %s120, 8
      %s122 = scalar_lea.vmem %s0, %s121
      %p123 = pneg %p34
      %p124 = pneg %p31
      %p125 = pneg %p55
      %p126 = pneg %p52
      %p127 = pneg %p81
      %p128 = pneg %p78
      %p129 = scmp.lt.s32.totalorder %s13, 1
      %s130 = scalar_select %p129, %s13, 1
      %s131 = smul.addr %s130, 4
      %s132 = smul.addr %s131, 8
      %s133 = scalar_lea.vmem %s2, %s132
      %p134 = scmp.lt.s32.totalorder %s13, 1
      %s135 = scalar_select %p134, %s13, 1
      %s136 = smul.addr %s135, 4
      %s137 = smul.addr %s136, 8
      %s138 = scalar_lea.vmem %s0, %s137
      %p139 = scmp.lt.s32.totalorder %s13, 1
      %s140 = scalar_select %p139, %s13, 1
      %s141 = smul.addr %s140, 4
      %s142 = smul.addr %s141, 8
      %s143 = scalar_lea.vmem %s2, %s142
      %v144 = vld [vmem:[%s1] sm:$0xff]
      %v145 = vld [vmem:[%s1 + $0x8] sm:$0xff]
      %v146 = vld [vmem:[%s1 + $0x10] sm:$0xff]
      %v147 = vld [vmem:[%s1 + $0x18] sm:$0xff]
      %v148 = vld [vmem:[%s138] sm:$0xff]
      %v149 = vld [vmem:[%s138 + $0x8] sm:$0xff]
      %v150 = vld [vmem:[%s138 + $0x10] sm:$0xff]
      %v151 = vld [vmem:[%s138 + $0x18] sm:$0xff]
      %v152 = vtanh.pop %v148
      %v153 = vtanh.pop %v149
      %v154 = vtanh.pop %v150
      %v155 = vtanh.pop %v151
      %vm156 = vcmask 261120
      %v158 = vsel %vm156, %v144, 0
      %v161 = vsel %vm156, %v145, 0
      %v164 = vsel %vm156, %v146, 0
      %v167 = vsel %vm156, %v147, 0
      %169 = vmatprep.subr.mxu0 0.0
      %170 = vmatpush1.msra.mxu0 0.0
      %171 = vmatprep.subr.mxu0 0.0
      %172 = vmatpush1.msra.mxu0 0.0
      %173 = vmatprep.subr.mxu0 0.0
      %174 = vmatpush1.msra.mxu0 0.0
      %175 = vmatprep.subr.mxu0 0.0
      %176 = vmatpush1.msra.mxu0 0.0
      %177 = vmatprep.subr.mxu0 0.0
      %178 = vmatpush1.msra.mxu0 0.0
      %179 = vmatprep.subr.mxu0 0.0
      %180 = vmatpush1.msra.mxu0 0.0
      %181 = vmatprep.subr.mxu0 0.0
      %182 = vmatpush1.msra.mxu0 0.0
      %183 = vmatprep.subr.mxu0 0.0
      %184 = vmatpush1.msra.mxu0 0.0
      %185 = vmatprep.subr.mxu0 0.0
      %186 = vmatpush1.msra.mxu0 0.0
      %187 = vmatprep.subr.mxu0 0.0
      %188 = vmatpush1.msra.mxu0 0.0
      %189 = vmatprep.subr.mxu0 0.0
      %190 = vmatpush1.msra.mxu0 0.0
      %191 = vmatprep.subr.mxu0 0.0
      %192 = vmatpush1.msra.mxu0 0.0
      %193 = vmatprep.subr.mxu0 0.0
      %194 = vmatpush1.msra.mxu0 %v155
      %195 = vmatprep.subr.mxu0 0.0
      %196 = vmatpush1.msra.mxu0 %v154
      %197 = vmatprep.subr.mxu0 0.0
      %198 = vmatpush1.msra.mxu0 %v153
      %199 = vmatprep.subr.mxu0 0.0
      %200 = vmatpush1.msra.mxu0 %v152
      %201 = vmatprep.subr.mxu0 0.0
      %202 = vmatpush2.msra.mxu0 0.0
      %203 = vmatprep.subr.mxu0 0.0
      %204 = vmatpush2.msra.mxu0 0.0
      %205 = vmatprep.subr.mxu0 0.0
      %206 = vmatpush2.msra.mxu0 0.0
      %207 = vmatprep.subr.mxu0 0.0
      %208 = vmatpush2.msra.mxu0 0.0
      %209 = vmatprep.subr.mxu0 0.0
      %210 = vmatpush2.msra.mxu0 0.0
      %211 = vmatprep.subr.mxu0 0.0
      %212 = vmatpush2.msra.mxu0 0.0
      %213 = vmatprep.subr.mxu0 0.0
      %214 = vmatpush2.msra.mxu0 0.0
      %215 = vmatprep.subr.mxu0 0.0
      %216 = vmatpush2.msra.mxu0 0.0
      %217 = vmatprep.subr.mxu0 0.0
      %218 = vmatpush2.msra.mxu0 0.0
      %219 = vmatprep.subr.mxu0 0.0
      %220 = vmatpush2.msra.mxu0 0.0
      %221 = vmatprep.subr.mxu0 0.0
      %222 = vmatpush2.msra.mxu0 0.0
      %223 = vmatprep.subr.mxu0 0.0
      %224 = vmatpush2.msra.mxu0 0.0
      %225 = vmatprep.subr.mxu0 0.0
      %226 = vmatpush2.msra.mxu0 0.0
      %227 = vmatprep.subr.mxu0 0.0
      %228 = vmatpush2.msra.mxu0 0.0
      %229 = vmatprep.subr.mxu0 0.0
      %230 = vmatpush2.msra.mxu0 0.0
      %231 = vmatprep.subr.mxu0 0.0
      %232 = vmatpush2.msra.mxu0 0.0
      %233 = vmatprep.mubr.f32.mxu0 0.0
      %234 = vmatmul.mubr.f32.gmra.mxu0 %v158
      %v235 = vpop.f32.mrf.mxu0
      %v236 = vadd.f32 0.0, %v235
      %v237 = vpop.f32.mrf.mxu0
      %238 = vmatprep.mubr.f32.mxu0 0.0
      %239 = vmatmul.mubr.f32.gmra.mxu0 %v161
      %v240 = vpop.f32.mrf.mxu0
      %v241 = vadd.f32 0.0, %v240
      %v242 = vpop.f32.mrf.mxu0
      %243 = vmatprep.mubr.f32.mxu0 0.0
      %244 = vmatmul.mubr.f32.gmra.mxu0 %v164
      %v245 = vpop.f32.mrf.mxu0
      %v246 = vadd.f32 0.0, %v245
      %v247 = vpop.f32.mrf.mxu0
      %248 = vmatprep.mubr.f32.mxu0 0.0
      %249 = vmatmul.mubr.f32.gmra.mxu0 %v167
      %v250 = vpop.f32.mrf.mxu0
      %v251 = vadd.f32 0.0, %v250
      %v252 = vpop.f32.mrf.mxu0
      %253 = vdwg.mxu0
      %v254 = vmul.f32 %v148, 0.9
      %v255 = vmul.f32 %v149, 0.9
      %v256 = vmul.f32 %v150, 0.9
      %v257 = vmul.f32 %v151, 0.9
      %v258 = vmul.f32 %v236, 0.1
      %v259 = vmul.f32 %v241, 0.1
      %v260 = vmul.f32 %v246, 0.1
      %v261 = vmul.f32 %v251, 0.1
      %v262 = vadd.f32 %v254, %v258
      %v263 = vadd.f32 %v255, %v259
      %v264 = vadd.f32 %v256, %v260
      %v265 = vadd.f32 %v257, %v261
      %vm266 = vcmask 7168
      %267 = vst.msk [vmem:[%s143] sm:$0xff] %vm266, %v148
      %268 = vst.msk [vmem:[%s143 + $0x8] sm:$0xff] %vm266, %v149
      %269 = vst.msk [vmem:[%s143 + $0x10] sm:$0xff] %vm266, %v150
      %270 = vst.msk [vmem:[%s143 + $0x18] sm:$0xff] %vm266, %v151
      %275 = vrot.lane.b32.xlu0 %v262, 1
      %v276 = vpop.permute.xlu0 %275
      %277 = vrot.lane.b32.xlu0 %v263, 1
      %v278 = vpop.permute.xlu0 %277
      %279 = vrot.lane.b32.xlu0 %v264, 1
      %v280 = vpop.permute.xlu0 %279
      %281 = vrot.lane.b32.xlu0 %v265, 1
      %v282 = vpop.permute.xlu0 %281
      %vm287 = vcmask 64520
      %288 = vst.msk [vmem:[%s143] sm:$0xff] %vm287, %v276
      %289 = vst.msk [vmem:[%s143 + $0x8] sm:$0xff] %vm287, %v278
      %290 = vst.msk [vmem:[%s143 + $0x10] sm:$0xff] %vm287, %v280
      %291 = vst.msk [vmem:[%s143 + $0x18] sm:$0xff] %vm287, %v282
      %p292 = scmp.lt.s32.totalorder %s13, 1
      %s293 = scalar_select %p292, %s13, 1
      %s294 = smul.addr %s293, 4
      %s295 = smul.addr %s294, 8
      %s296 = scalar_lea.vmem %s2, %s295
      // Predicated region
      $region29: #{tpu_custom_call.1} parent=27 // pred_check
        %p297 = pneg %p78
      $region30: #{tpu_custom_call.1} parent=27 // pred_check_branch
        %299 = sbr.rel (%p297) target = $region32
      $region31: #{tpu_custom_call.1} parent=27 // pred_region
        _
      $region32: #{tpu_custom_call.1} parent=27 // pred_fallthru
        _
    $region28: #{tpu_custom_call.1} parent=5 // pred_fallthru
      _
    %p300 = scmp.le.s32.totalorder 2, %s8
    // Predicated region
    $region33: #{tpu_custom_call.1} parent=5 // pred_check
      %p301 = pneg %p300
    $region34: #{tpu_custom_call.1} parent=5 // pred_check_branch
      %303 = sbr.rel (%p301) target = $region36
    $region35: #{tpu_custom_call.1} parent=5 // pred_region
      %s304 = ssub.s32 %s8, 2
      // Predicated region
      $region37: #{tpu_custom_call.1} parent=35 // pred_check
        %p305 = pneg %p84
      $region38: #{tpu_custom_call.1} parent=35 // pred_check_branch
        %307 = sbr.rel (%p305) target = $region40
      $region39: #{tpu_custom_call.1} parent=35 // pred_region
        %p308 = scmp.lt.s32.totalorder %s14, 1
        %s309 = scalar_select %p308, %s14, 1
        %s310 = smul.addr %s309, 4
        %s311 = smul.addr %s310, 8
        %s312 = scalar_lea.vmem %s2, %s311
      $region40: #{tpu_custom_call.1} parent=35 // pred_fallthru
        _
    $region36: #{tpu_custom_call.1} parent=5 // pred_fallthru
      _
  $region6: #{tpu_custom_call.1} parent=0 // loop_footer
    %s12 = sadd.s32 1, %s8
  $region7: #{tpu_custom_call.1} parent=0 // loop_footer_branch
    %7 = sbr.rel target = $region3
  $region8: #{tpu_custom_call.1} parent=0 // loop_exit
    _

</llo_original>
